<compile_context>
chip_gen: v7x
topology: tpu7x:2x2x1
jax: 0.10.0
libtpu: 0.0.40
codegen_flags: <defaults>
</compile_context>

<pallas_src>
import functools

import jax
import jax.numpy as jnp
from jax.experimental import pallas as pl
from jax.experimental.pallas import tpu as pltpu

LN_EPS = 1e-5  # PyTorch nn.LayerNorm default


def _round_up(x, m):
    return (x + m - 1) // m * m


def _vmem_capacity_bytes():
    try:
        return int(pltpu.get_tpu_info().vmem_capacity_bytes)
    except Exception:
        return 64 * 1024 * 1024  # conservative (v7x per-TC)


def rl_projection_kernel(x_ref, w_ref, b_ref, g_ref, beta_ref, o_ref, *,
                         true_out_dim, matmul_dtype):
    # Linear: (TB, in_dim) @ (in_dim, N_pad) + (1, N_pad).
    # x is cast to the matmul dtype in-kernel (no extra HBM pass); the MXU
    # accumulates in f32.
    x = x_ref[...].astype(matmul_dtype)
    h = jnp.dot(x, w_ref[...], preferred_element_type=jnp.float32)
    h = h + b_ref[...]

    # One-pass LayerNorm statistics. Padded columns of h are exactly 0
    # (zero W columns + zero bias), so sums over the padded row equal sums
    # over the true out_dim columns; divide by the TRUE feature count.
    inv_d = 1.0 / float(true_out_dim)
    s1 = jnp.sum(h, axis=-1, keepdims=True)
    s2 = jnp.sum(h * h, axis=-1, keepdims=True)
    mean = s1 * inv_d
    var = jnp.maximum(s2 * inv_d - mean * mean, 0.0)  # clamp f32 cancellation
    inv_std = jax.lax.rsqrt(var + LN_EPS)

    h_norm = (h - mean) * inv_std
    # gamma/beta are zero-padded -> padded lanes become tanh(0) == 0.
    h_affine = h_norm * g_ref[...] + beta_ref[...]
    o_ref[...] = jnp.tanh(h_affine).astype(o_ref.dtype)


def rl_projection(x, w, b, gamma, beta, *, block_b=1024,
                  matmul_dtype=jnp.bfloat16, return_padded=False):
    """x: (B, in_dim), w: (in_dim, out_dim), b/gamma/beta: (out_dim,)/(1, out_dim)."""
    B, in_dim = x.shape
    out_dim = w.shape[1]
    out_dtype = x.dtype

    # Lane-dense feature padding (multiple of 128).
    n_pad = _round_up(out_dim, 128)

    x_bytes = jnp.dtype(x.dtype).itemsize
    mm_bytes = jnp.dtype(matmul_dtype).itemsize
    out_bytes = jnp.dtype(out_dtype).itemsize

    # Generation-aware VMEM budget.
    vmem_cap = _vmem_capacity_bytes()
    if vmem_cap >= 96 * 1024 * 1024:          # v5e / v6e (128 MiB physical)
        budget, vmem_limit = 64 * 1024 * 1024, 96 * 1024 * 1024
    else:                                     # v7x (64 MiB per TensorCore)
        budget, vmem_limit = 24 * 1024 * 1024, 32 * 1024 * 1024

    # Resident parameters: single-buffered (grid-invariant index_map).
    param_bytes = in_dim * n_pad * mm_bytes + 3 * n_pad * 4

    def tile_bytes(t):  # double-buffered x tile + out tile
        return 2 * t * (in_dim * x_bytes + n_pad * out_bytes)

    tb_floor = min(128, _round_up(B, 8))
    tb = max(8, min(block_b, _round_up(B, 8)))
    while tb > tb_floor and tile_bytes(tb) + param_bytes > budget:
        tb = max(tb_floor, _round_up(tb // 2, 8))
    # TODO(synk): if param_bytes alone exceeds the budget (huge in_dim*out_dim
    # weights), split the reduction over in_dim with an f32 VMEM accumulator
    # (pl.when init/finalize, axis "arbitrary") instead of shrinking tb.

    # Give the "parallel" batch axis at least 2 steps so both v7x TensorCores
    # get work (no-op for small B).
    if B >= 256 and pl.cdiv(B, tb) < 2:
        tb = min(tb, _round_up(pl.cdiv(B, 2), 8))

    grid = (pl.cdiv(B, tb),)

    # Pad / cast the (small, one-time) parameters. Padded columns are zeros ->
    # numerically inert for the LN sums; zero gamma/beta pin padded outputs to 0.
    w_p = jnp.zeros((in_dim, n_pad), matmul_dtype).at[:, :out_dim].set(
        w.astype(matmul_dtype))
    b_p = jnp.zeros((1, n_pad), jnp.float32).at[:, :out_dim].set(
        jnp.reshape(b, (1, -1)).astype(jnp.float32))
    g_p = jnp.zeros((1, n_pad), jnp.float32).at[:, :out_dim].set(
        jnp.reshape(gamma, (1, -1)).astype(jnp.float32))
    beta_p = jnp.zeros((1, n_pad), jnp.float32).at[:, :out_dim].set(
        jnp.reshape(beta, (1, -1)).astype(jnp.float32))

    cost = pl.CostEstimate(
        flops=2 * B * in_dim * n_pad,
        transcendentals=B * n_pad + B,  # tanh + per-row rsqrt
        bytes_accessed=(B * in_dim * x_bytes
                        + in_dim * n_pad * mm_bytes
                        + 3 * n_pad * 4
                        + B * n_pad * out_bytes),
    )

    kernel = functools.partial(rl_projection_kernel,
                               true_out_dim=out_dim,
                               matmul_dtype=matmul_dtype)

    def make_call(single_buffer_params):
        pm = ({"pipeline_mode": pl.Buffered(1)} if single_buffer_params else {})
        return pl.pallas_call(
            kernel,
            out_shape=jax.ShapeDtypeStruct((B, n_pad), out_dtype),
            grid_spec=pl.GridSpec(
                grid=grid,
                in_specs=[
                    pl.BlockSpec((tb, in_dim), lambda i: (i, 0)),        # x tile
                    pl.BlockSpec((in_dim, n_pad), lambda i: (0, 0), **pm),  # W
                    pl.BlockSpec((1, n_pad), lambda i: (0, 0), **pm),    # bias
                    pl.BlockSpec((1, n_pad), lambda i: (0, 0), **pm),    # gamma
                    pl.BlockSpec((1, n_pad), lambda i: (0, 0), **pm),    # beta
                ],
                out_specs=pl.BlockSpec((tb, n_pad), lambda i: (i, 0)),
            ),
            compiler_params=pltpu.CompilerParams(
                dimension_semantics=("parallel",),
                vmem_limit_bytes=vmem_limit,
            ),
            cost_estimate=cost,
        )

    try:
        out = make_call(True)(x, w_p, b_p, g_p, beta_p)
    except Exception:
        # Fallback if this jax build rejects Buffered(1) on grid-invariant
        # operands; default double-buffering of the small params is fine.
        out = make_call(False)(x, w_p, b_p, g_p, beta_p)

    if return_padded:
        return out
    return out if n_pad == out_dim else out[:, :out_dim]


def orthogonal_init(key, rows, cols, dtype=jnp.float32):
    """Deterministic orthogonal init (matches nn.init.orthogonal_ semantics)."""
    n, m = (rows, cols) if rows >= cols else (cols, rows)
    a = jax.random.normal(key, (n, m), dtype=jnp.float32)
    q, r = jnp.linalg.qr(a)
    d = jnp.sign(jnp.diagonal(r))
    q = q * d[None, :]
    if rows < cols:
        q = q.T
    return q.astype(dtype)


if __name__ == "__main__":
    key = jax.random.PRNGKey(0)
    k_x, k_w = jax.random.split(key)

    B, in_dim, out_dim = 8, 32, 64  # in_shape = (32,), out_dim = 64

    x = jax.random.normal(k_x, (B, in_dim), dtype=jnp.float32)

    # nn.Linear weight: (out_dim, in_dim), orthogonal init; bias filled with 0.
    w_torch_layout = orthogonal_init(k_w, out_dim, in_dim)  # (out, in)
    w = jnp.transpose(w_torch_layout)                       # (in, out)
    b = jnp.zeros((1, out_dim), dtype=jnp.float32)

    # nn.LayerNorm defaults: weight = 1, bias = 0.
    gamma = jnp.ones((1, out_dim), dtype=jnp.float32)
    beta = jnp.zeros((1, out_dim), dtype=jnp.float32)

    out = rl_projection(x, w, b, gamma, beta)
    jax.block_until_ready(out)

    # Reference in plain JAX with the same bf16 matmul operands / f32 accumulate.
    h_ref = jnp.dot(x.astype(jnp.bfloat16), w.astype(jnp.bfloat16),
                    preferred_element_type=jnp.float32) + b
    mean = jnp.mean(h_ref, axis=-1, keepdims=True)
    var = jnp.mean((h_ref - mean) ** 2, axis=-1, keepdims=True)
    ref = jnp.tanh((h_ref - mean) / jnp.sqrt(var + LN_EPS) * gamma + beta)

    assert out.shape == (B, out_dim)
    assert out.dtype == x.dtype
    assert jnp.allclose(out, ref, atol=1e-4, rtol=1e-4), (
        float(jnp.max(jnp.abs(out - ref))))

    print("KERNEL_OK")
</pallas_src>

<mosaic_0001>
module attributes {stable_mosaic.version = 11 : i64} {
  func.func @rl_projection_kernel(%arg0: i32, %arg1: memref<8x32xf32, #tpu.memory_space<vmem>>, %arg2: memref<32x128xbf16, #tpu.memory_space<vmem>>, %arg3: memref<1x128xf32, #tpu.memory_space<vmem>>, %arg4: memref<1x128xf32, #tpu.memory_space<vmem>>, %arg5: memref<1x128xf32, #tpu.memory_space<vmem>>, %arg6: memref<8x128xf32, #tpu.memory_space<vmem>>) attributes {dimension_semantics = [#tpu.dimension_semantics<parallel>], iteration_bounds = array<i64: 1>, scalar_prefetch = 0 : i64, scratch_operands = 0 : i64, tpu.core_type = #tpu.core_type<tc>, window_params = [{transform_indices = @transform_0, window_bounds = array<i64: 8, 32>}, {pipeline_mode = #tpu.pipeline_mode<synchronous>, transform_indices = @transform_1, window_bounds = array<i64: 32, 128>}, {pipeline_mode = #tpu.pipeline_mode<synchronous>, transform_indices = @transform_2, window_bounds = array<i64: 1, 128>}, {pipeline_mode = #tpu.pipeline_mode<synchronous>, transform_indices = @transform_3, window_bounds = array<i64: 1, 128>}, {pipeline_mode = #tpu.pipeline_mode<synchronous>, transform_indices = @transform_4, window_bounds = array<i64: 1, 128>}, {transform_indices = @transform_5, window_bounds = array<i64: 8, 128>}]} {
    %c0 = arith.constant 0 : index
    %c0_0 = arith.constant 0 : index
    %0 = vector.load %arg1[%c0, %c0_0] : memref<8x32xf32, #tpu.memory_space<vmem>>, vector<8x32xf32>
    %1 = arith.truncf %0 : vector<8x32xf32> to vector<8x32xbf16>
    %c0_1 = arith.constant 0 : index
    %c0_2 = arith.constant 0 : index
    %2 = vector.load %arg2[%c0_1, %c0_2] : memref<32x128xbf16, #tpu.memory_space<vmem>>, vector<32x128xbf16>
    %cst = arith.constant dense<0.000000e+00> : vector<8x128xf32>
    %3 = tpu.matmul %1, %2, %cst {dimension_numbers = #tpu.dot_dimension_numbers<[1], [0], [0], [1], [0, 0, 1, 1], [], []>} : vector<8x32xbf16>, vector<32x128xbf16>, vector<8x128xf32> -> vector<8x128xf32>
    %c0_3 = arith.constant 0 : index
    %c0_4 = arith.constant 0 : index
    %4 = vector.load %arg3[%c0_3, %c0_4] : memref<1x128xf32, #tpu.memory_space<vmem>>, vector<1x128xf32>
    %5 = vector.broadcast %4 : vector<1x128xf32> to vector<8x128xf32>
    %6 = arith.addf %3, %5 : vector<8x128xf32>
    %cst_5 = arith.constant dense<0.000000e+00> : vector<8xf32>
    %7 = vector.multi_reduction <add>, %6, %cst_5 [1] : vector<8x128xf32> to vector<8xf32>
    %8 = vector.shape_cast %7 : vector<8xf32> to vector<8x1xf32>
    %9 = arith.mulf %6, %6 : vector<8x128xf32>
    %cst_6 = arith.constant dense<0.000000e+00> : vector<8xf32>
    %10 = vector.multi_reduction <add>, %9, %cst_6 [1] : vector<8x128xf32> to vector<8xf32>
    %11 = vector.shape_cast %10 : vector<8xf32> to vector<8x1xf32>
    %cst_7 = arith.constant 1.562500e-02 : f32
    %12 = vector.broadcast %cst_7 : f32 to vector<8x1xf32>
    %13 = arith.mulf %8, %12 : vector<8x1xf32>
    %cst_8 = arith.constant 1.562500e-02 : f32
    %14 = vector.broadcast %cst_8 : f32 to vector<8x1xf32>
    %15 = arith.mulf %11, %14 : vector<8x1xf32>
    %16 = arith.mulf %13, %13 : vector<8x1xf32>
    %17 = arith.subf %15, %16 : vector<8x1xf32>
    %cst_9 = arith.constant 0.000000e+00 : f32
    %18 = vector.broadcast %cst_9 : f32 to vector<8x1xf32>
    %19 = arith.maximumf %17, %18 : vector<8x1xf32>
    %cst_10 = arith.constant 9.99999974E-6 : f32
    %20 = vector.broadcast %cst_10 : f32 to vector<8x1xf32>
    %21 = arith.addf %19, %20 : vector<8x1xf32>
    %22 = math.rsqrt %21 : vector<8x1xf32>
    %23 = vector.broadcast %13 : vector<8x1xf32> to vector<8x128xf32>
    %24 = arith.subf %6, %23 : vector<8x128xf32>
    %25 = vector.broadcast %22 : vector<8x1xf32> to vector<8x128xf32>
    %26 = arith.mulf %24, %25 : vector<8x128xf32>
    %c0_11 = arith.constant 0 : index
    %c0_12 = arith.constant 0 : index
    %27 = vector.load %arg4[%c0_11, %c0_12] : memref<1x128xf32, #tpu.memory_space<vmem>>, vector<1x128xf32>
    %28 = vector.broadcast %27 : vector<1x128xf32> to vector<8x128xf32>
    %29 = arith.mulf %26, %28 : vector<8x128xf32>
    %c0_13 = arith.constant 0 : index
    %c0_14 = arith.constant 0 : index
    %30 = vector.load %arg5[%c0_13, %c0_14] : memref<1x128xf32, #tpu.memory_space<vmem>>, vector<1x128xf32>
    %31 = vector.broadcast %30 : vector<1x128xf32> to vector<8x128xf32>
    %32 = arith.addf %29, %31 : vector<8x128xf32>
    %33 = math.tanh %32 : vector<8x128xf32>
    %c0_15 = arith.constant 0 : index
    %c0_16 = arith.constant 0 : index
    %34 = vector.load %arg6[%c0_15, %c0_16] : memref<8x128xf32, #tpu.memory_space<vmem>>, vector<8x128xf32>
    tpu.vector_store %arg6[%c0_15, %c0_16], %33 {strides = array<i32>} : memref<8x128xf32, #tpu.memory_space<vmem>>, vector<8x128xf32>,
    return
  }
  func.func @transform_0(%arg0: i32) -> (i32, i32) {
    %c0_i32 = arith.constant 0 : i32
    %c0_i32_0 = arith.constant 0 : i32
    return %arg0, %c0_i32 : i32, i32
  }
  func.func @transform_1(%arg0: i32) -> (i32, i32) {
    %c0_i32 = arith.constant 0 : i32
    %c0_i32_0 = arith.constant 0 : i32
    %c0_i32_1 = arith.constant 0 : i32
    return %c0_i32, %c0_i32_0 : i32, i32
  }
  func.func @transform_2(%arg0: i32) -> (i32, i32) {
    %c0_i32 = arith.constant 0 : i32
    %c0_i32_0 = arith.constant 0 : i32
    %c0_i32_1 = arith.constant 0 : i32
    return %c0_i32, %c0_i32_0 : i32, i32
  }
  func.func @transform_3(%arg0: i32) -> (i32, i32) {
    %c0_i32 = arith.constant 0 : i32
    %c0_i32_0 = arith.constant 0 : i32
    %c0_i32_1 = arith.constant 0 : i32
    return %c0_i32, %c0_i32_0 : i32, i32
  }
  func.func @transform_4(%arg0: i32) -> (i32, i32) {
    %c0_i32 = arith.constant 0 : i32
    %c0_i32_0 = arith.constant 0 : i32
    %c0_i32_1 = arith.constant 0 : i32
    return %c0_i32, %c0_i32_0 : i32, i32
  }
  func.func @transform_5(%arg0: i32) -> (i32, i32) {
    %c0_i32 = arith.constant 0 : i32
    %c0_i32_0 = arith.constant 0 : i32
    return %arg0, %c0_i32 : i32, i32
  }
}

module attributes {stable_mosaic.version = 11 : i64} {
  func.func @rl_projection_kernel(%arg0: i32, %arg1: memref<8x32xf32, #tpu.memory_space<vmem>>, %arg2: memref<32x128xbf16, #tpu.memory_space<vmem>>, %arg3: memref<1x128xf32, #tpu.memory_space<vmem>>, %arg4: memref<1x128xf32, #tpu.memory_space<vmem>>, %arg5: memref<1x128xf32, #tpu.memory_space<vmem>>, %arg6: memref<8x128xf32, #tpu.memory_space<vmem>>) attributes {dimension_semantics = [#tpu.dimension_semantics<parallel>], iteration_bounds = array<i64: 1>, scalar_prefetch = 0 : i64, scratch_operands = 0 : i64, tpu.core_type = #tpu.core_type<tc>, window_params = [{transform_indices = @transform_0, window_bounds = array<i64: 8, 32>}, {pipeline_mode = #tpu.pipeline_mode<synchronous>, transform_indices = @transform_1, window_bounds = array<i64: 32, 128>}, {pipeline_mode = #tpu.pipeline_mode<synchronous>, transform_indices = @transform_2, window_bounds = array<i64: 1, 128>}, {pipeline_mode = #tpu.pipeline_mode<synchronous>, transform_indices = @transform_3, window_bounds = array<i64: 1, 128>}, {pipeline_mode = #tpu.pipeline_mode<synchronous>, transform_indices = @transform_4, window_bounds = array<i64: 1, 128>}, {transform_indices = @transform_5, window_bounds = array<i64: 8, 128>}]} {
    %c0 = arith.constant 0 : index
    %c0_0 = arith.constant 0 : index
    %0 = vector.load %arg1[%c0, %c0_0] : memref<8x32xf32, #tpu.memory_space<vmem>>, vector<8x32xf32>
    %1 = arith.truncf %0 : vector<8x32xf32> to vector<8x32xbf16>
    %c0_1 = arith.constant 0 : index
    %c0_2 = arith.constant 0 : index
    %2 = vector.load %arg2[%c0_1, %c0_2] : memref<32x128xbf16, #tpu.memory_space<vmem>>, vector<32x128xbf16>
    %cst = arith.constant dense<0.000000e+00> : vector<8x128xf32>
    %3 = tpu.matmul %1, %2, %cst {dimension_numbers = #tpu.dot_dimension_numbers<[1], [0], [0], [1], [0, 0, 1, 1], [], []>} : vector<8x32xbf16>, vector<32x128xbf16>, vector<8x128xf32> -> vector<8x128xf32>
    %c0_3 = arith.constant 0 : index
    %c0_4 = arith.constant 0 : index
    %4 = vector.load %arg3[%c0_3, %c0_4] : memref<1x128xf32, #tpu.memory_space<vmem>>, vector<1x128xf32>
    %5 = vector.broadcast %4 : vector<1x128xf32> to vector<8x128xf32>
    %6 = arith.addf %3, %5 : vector<8x128xf32>
    %cst_5 = arith.constant dense<0.000000e+00> : vector<8xf32>
    %7 = vector.multi_reduction <add>, %6, %cst_5 [1] : vector<8x128xf32> to vector<8xf32>
    %8 = vector.shape_cast %7 : vector<8xf32> to vector<8x1xf32>
    %9 = arith.mulf %6, %6 : vector<8x128xf32>
    %cst_6 = arith.constant dense<0.000000e+00> : vector<8xf32>
    %10 = vector.multi_reduction <add>, %9, %cst_6 [1] : vector<8x128xf32> to vector<8xf32>
    %11 = vector.shape_cast %10 : vector<8xf32> to vector<8x1xf32>
    %cst_7 = arith.constant 1.562500e-02 : f32
    %12 = vector.broadcast %cst_7 : f32 to vector<8x1xf32>
    %13 = arith.mulf %8, %12 : vector<8x1xf32>
    %cst_8 = arith.constant 1.562500e-02 : f32
    %14 = vector.broadcast %cst_8 : f32 to vector<8x1xf32>
    %15 = arith.mulf %11, %14 : vector<8x1xf32>
    %16 = arith.mulf %13, %13 : vector<8x1xf32>
    %17 = arith.subf %15, %16 : vector<8x1xf32>
    %cst_9 = arith.constant 0.000000e+00 : f32
    %18 = vector.broadcast %cst_9 : f32 to vector<8x1xf32>
    %19 = arith.maximumf %17, %18 : vector<8x1xf32>
    %cst_10 = arith.constant 9.99999974E-6 : f32
    %20 = vector.broadcast %cst_10 : f32 to vector<8x1xf32>
    %21 = arith.addf %19, %20 : vector<8x1xf32>
    %22 = math.rsqrt %21 : vector<8x1xf32>
    %23 = vector.broadcast %13 : vector<8x1xf32> to vector<8x128xf32>
    %24 = arith.subf %6, %23 : vector<8x128xf32>
    %25 = vector.broadcast %22 : vector<8x1xf32> to vector<8x128xf32>
    %26 = arith.mulf %24, %25 : vector<8x128xf32>
    %c0_11 = arith.constant 0 : index
    %c0_12 = arith.constant 0 : index
    %27 = vector.load %arg4[%c0_11, %c0_12] : memref<1x128xf32, #tpu.memory_space<vmem>>, vector<1x128xf32>
    %28 = vector.broadcast %27 : vector<1x128xf32> to vector<8x128xf32>
    %29 = arith.mulf %26, %28 : vector<8x128xf32>
    %c0_13 = arith.constant 0 : index
    %c0_14 = arith.constant 0 : index
    %30 = vector.load %arg5[%c0_13, %c0_14] : memref<1x128xf32, #tpu.memory_space<vmem>>, vector<1x128xf32>
    %31 = vector.broadcast %30 : vector<1x128xf32> to vector<8x128xf32>
    %32 = arith.addf %29, %31 : vector<8x128xf32>
    %33 = math.tanh %32 : vector<8x128xf32>
    %c0_15 = arith.constant 0 : index
    %c0_16 = arith.constant 0 : index
    %34 = vector.load %arg6[%c0_15, %c0_16] : memref<8x128xf32, #tpu.memory_space<vmem>>, vector<8x128xf32>
    tpu.vector_store %arg6[%c0_15, %c0_16], %33 {strides = array<i32>} : memref<8x128xf32, #tpu.memory_space<vmem>>, vector<8x128xf32>,
    return
  }
  func.func @transform_0(%arg0: i32) -> (i32, i32) {
    %c0_i32 = arith.constant 0 : i32
    %c0_i32_0 = arith.constant 0 : i32
    return %arg0, %c0_i32 : i32, i32
  }
  func.func @transform_1(%arg0: i32) -> (i32, i32) {
    %c0_i32 = arith.constant 0 : i32
    %c0_i32_0 = arith.constant 0 : i32
    %c0_i32_1 = arith.constant 0 : i32
    return %c0_i32, %c0_i32_0 : i32, i32
  }
  func.func @transform_2(%arg0: i32) -> (i32, i32) {
    %c0_i32 = arith.constant 0 : i32
    %c0_i32_0 = arith.constant 0 : i32
    %c0_i32_1 = arith.constant 0 : i32
    return %c0_i32, %c0_i32_0 : i32, i32
  }
  func.func @transform_3(%arg0: i32) -> (i32, i32) {
    %c0_i32 = arith.constant 0 : i32
    %c0_i32_0 = arith.constant 0 : i32
    %c0_i32_1 = arith.constant 0 : i32
    return %c0_i32, %c0_i32_0 : i32, i32
  }
  func.func @transform_4(%arg0: i32) -> (i32, i32) {
    %c0_i32 = arith.constant 0 : i32
    %c0_i32_0 = arith.constant 0 : i32
    %c0_i32_1 = arith.constant 0 : i32
    return %c0_i32, %c0_i32_0 : i32, i32
  }
  func.func @transform_5(%arg0: i32) -> (i32, i32) {
    %c0_i32 = arith.constant 0 : i32
    %c0_i32_0 = arith.constant 0 : i32
    return %arg0, %c0_i32 : i32, i32
  }
}

</mosaic_0001>

<llo_original>
// kernel: tpu_custom_call.1
$region0: #{tpu_custom_call.1}
  #allocation0 [shape = 'u32[]', space=smem, size = 0x4, offset = 0x4, fixed_abs, tag = 'smem constant byte address 0x4 - core index']
  #allocation1 [shape = 'u32[144,128]{1,0:T(1,128)}', space=vmem, size = 0x12000, scoped, tag = 'internal scratch']
  %s0 = inlined_call_operand.hbm [shape: f32[8,32], index: 0, kind: input, shape index: {}]
  %s1 = inlined_call_operand.hbm [shape: bf16[32,128], index: 1, kind: input, shape index: {}]
  %s2 = inlined_call_operand.vmem [shape: f32[1,128], index: 2, kind: input, shape index: {}]
  %s3 = inlined_call_operand.vmem [shape: f32[1,128], index: 3, kind: input, shape index: {}]
  %s4 = inlined_call_operand.vmem [shape: f32[1,128], index: 4, kind: input, shape index: {}]
  %s5 = inlined_call_operand.hbm [shape: f32[8,128], index: 5, kind: output, shape index: {}]
  %s6 = sld [smem:[#allocation0]]
  $region38: #{tpu_custom_call.1} parent=0
    _
  %s8 = ssub.s32 1, %s6
  %s9 = scalar_select 0, %s8, %s6
  $region1: #{tpu_custom_call.1} parent=0
    #allocation2 [shape = 'u8[4096]{0}', space=vmem, size = 0x1000, scoped, tag = 'input window, operand 0, single buffered']
    #allocation3 [shape = 's32[1]{0}', space=sflag, size = 0x4, scoped, tag = 'scoped memory for tpu_custom_call.1']
    #allocation4 [shape = 's32[1]{0}', space=sflag, size = 0x4, scoped, tag = 'scoped memory for tpu_custom_call.1']
    #allocation5 [shape = 'u8[8192]{0}', space=vmem, size = 0x2000, scoped, tag = 'input window, operand 1, single buffered']
    #allocation6 [shape = 's32[1]{0}', space=sflag, size = 0x4, scoped, tag = 'scoped memory for tpu_custom_call.1']
    #allocation7 [shape = 'u8[4096]{0}', space=vmem, size = 0x1000, scoped, tag = 'output window, operand 0, single buffered']
    %10 = vsyncpa [#allocation3], 0
    %11 = vsyncpa [#allocation6], 0
    %12 = vsyncpa [#allocation4], 0
    // Predicated region
    $region2: #{tpu_custom_call.1} parent=1 // pred_check
      _
    $region3: #{tpu_custom_call.1} parent=1 // pred_check_branch
      %14 = sbr.rel (0) target = $region5
    $region4: #{tpu_custom_call.1} parent=1 // pred_region
      %s16 = ssub.s32 128, 128
      %17 = vsyncadd [#allocation3], %s16
      %s19 = sshll.u32 [#allocation2], 4
      %s20 = int_to_ptr.vmem [resolvable:$true] %s19
      %22 = dma.hbm_to_vmem [thread:$0]  %s0, 128, %s20, [#allocation3]
    $region5: #{tpu_custom_call.1} parent=1 // pred_fallthru
      _
    // Predicated region
    $region6: #{tpu_custom_call.1} parent=1 // pred_check
      _
    $region7: #{tpu_custom_call.1} parent=1 // pred_check_branch
      %24 = sbr.rel (0) target = $region9
    $region8: #{tpu_custom_call.1} parent=1 // pred_region
      %s26 = ssub.s32 256, 256
      %27 = vsyncadd [#allocation6], %s26
      %s28 = sshll.u32 [#allocation5], 4
      %s29 = int_to_ptr.vmem [resolvable:$true] %s28
      %34 = dma.hbm_to_vmem [thread:$0]  %s1, 256, %s29, [#allocation6], 64, 64, 4
    $region9: #{tpu_custom_call.1} parent=1 // pred_fallthru
      _
    // Predicated region
    $region10: #{tpu_custom_call.1} parent=1 // pred_check
      _
    $region11: #{tpu_custom_call.1} parent=1 // pred_check_branch
      %36 = sbr.rel (0) target = $region13
    $region12: #{tpu_custom_call.1} parent=1 // pred_region
      _
    $region13: #{tpu_custom_call.1} parent=1 // pred_fallthru
      _
    // Predicated region
    $region14: #{tpu_custom_call.1} parent=1 // pred_check
      _
    $region15: #{tpu_custom_call.1} parent=1 // pred_check_branch
      %38 = sbr.rel (0) target = $region17
    $region16: #{tpu_custom_call.1} parent=1 // pred_region
      _
    $region17: #{tpu_custom_call.1} parent=1 // pred_fallthru
      _
    // Predicated region
    $region18: #{tpu_custom_call.1} parent=1 // pred_check
      _
    $region19: #{tpu_custom_call.1} parent=1 // pred_check_branch
      %40 = sbr.rel (0) target = $region21
    $region20: #{tpu_custom_call.1} parent=1 // pred_region
      _
    $region21: #{tpu_custom_call.1} parent=1 // pred_fallthru
      _
    // Predicated region
    $region22: #{tpu_custom_call.1} parent=1 // pred_check
      _
    $region23: #{tpu_custom_call.1} parent=1 // pred_check_branch
      %42 = sbr.rel (0) target = $region25
    $region24: #{tpu_custom_call.1} parent=1 // pred_region
      %43 = dma.done [#allocation3], 128
    $region25: #{tpu_custom_call.1} parent=1 // pred_fallthru
      _
    // Predicated region
    $region26: #{tpu_custom_call.1} parent=1 // pred_check
      _
    $region27: #{tpu_custom_call.1} parent=1 // pred_check_branch
      %45 = sbr.rel (0) target = $region29
    $region28: #{tpu_custom_call.1} parent=1 // pred_region
      %46 = dma.done [#allocation6], 256
    $region29: #{tpu_custom_call.1} parent=1 // pred_fallthru
      _
    %v48 = vld [vmem:[#allocation2] sm:$0xff]
    %v49 = vpack.c.bf16 %v48, %v48
    %v50 = vld [vmem:[#allocation5] sm:$0xf]
    %v51 = vld [vmem:[#allocation5 + $0x4] sm:$0xf]
    %v52 = vld [vmem:[#allocation5 + $0x8] sm:$0xf]
    %v53 = vld [vmem:[#allocation5 + $0xc] sm:$0xf]
    %v54 = vld [vmem:[%s2] sm:$0x1]
    %v56 = vlaneseq
    %v57 = vshrl.u32 %v56, 7
    %v58 = vsub.s32 0, %v57
    %v59 = vrot.slane %v54, %v58
    %v65 = vunpack.c.l.b16 %v50
    %v66 = vunpack.c.l.b16 %v51
    %v67 = vunpack.c.l.b16 %v52
    %v68 = vunpack.c.l.b16 %v53
    %v69 = vpack.c.b16 %v66, %v65
    %v70 = vpack.c.b16 %v68, %v67
    %vm73 = vcmask 261120
    %v75 = vsel %vm73, %v49, 0
    %77 = vmatprep.subr.bf16.mxu0 0
    %78 = vmatpush1.bf16.msra.mxu0 %v69
    %79 = vmatprep.subr.bf16.mxu0 0
    %80 = vmatpush1.bf16.msra.mxu0 %v70
    %81 = vmatprep.subr.bf16.mxu0 0
    %82 = vmatpush1.bf16.msra.mxu0 0
    %83 = vmatprep.subr.bf16.mxu0 0
    %84 = vmatpush1.bf16.msra.mxu0 0
    %85 = vmatprep.subr.bf16.mxu0 0
    %86 = vmatpush1.bf16.msra.mxu0 0
    %87 = vmatprep.subr.bf16.mxu0 0
    %88 = vmatpush1.bf16.msra.mxu0 0
    %89 = vmatprep.subr.bf16.mxu0 0
    %90 = vmatpush1.bf16.msra.mxu0 0
    %91 = vmatprep.subr.bf16.mxu0 0
    %92 = vmatpush1.bf16.msra.mxu0 0
    %93 = vmatprep.subr.bf16.mxu0 0
    %94 = vmatpush1.bf16.msra.mxu0 0
    %95 = vmatprep.subr.bf16.mxu0 0
    %96 = vmatpush1.bf16.msra.mxu0 0
    %97 = vmatprep.subr.bf16.mxu0 0
    %98 = vmatpush1.bf16.msra.mxu0 0
    %99 = vmatprep.subr.bf16.mxu0 0
    %100 = vmatpush1.bf16.msra.mxu0 0
    %101 = vmatprep.subr.bf16.mxu0 0
    %102 = vmatpush1.bf16.msra.mxu0 0
    %103 = vmatprep.subr.bf16.mxu0 0
    %104 = vmatpush1.bf16.msra.mxu0 0
    %105 = vmatprep.subr.bf16.mxu0 0
    %106 = vmatpush1.bf16.msra.mxu0 0
    %107 = vmatprep.subr.bf16.mxu0 0
    %108 = vmatpush1.bf16.msra.mxu0 0
    %109 = vmatprep.mubr.bf16.mxu0 0
    %110 = vmatmul.mubr.bf16.gmra.mrb[0].mxu0 %v75
    %v111 = vpop.f32.mrb[0].mxu0
    %v112 = vadd.f32 %v59, %v111
    %v113 = vpop.f32.mrb[0].mxu0
    %v114 = vpop.f32.mrb[0].mxu0
    %v115 = vpop.f32.mrb[0].mxu0
    %116 = vdwg.mxu0
    %117 = vadd.xlane.f32.xlu0 %v112
    %v118 = vpop.xlane.xlu0 %117
    %v119 = vmul.f32 %v112, %v112
    %120 = vadd.xlane.f32.xlu0 %v119
    %v121 = vpop.xlane.xlu0 %120
    %v122 = vmul.f32 %v118, 0.015625
    %v123 = vmul.f32 %v121, 0.015625
    %v124 = vmul.f32 %v122, %v122
    %v125 = vsub.f32 %v123, %v124
    %v126 = vmax.f32 %v125, 0.0
    %v127 = vadd.f32 %v126, 1e-05
    %v128 = vrsqrt.pop %v127
    %v129 = vsub.f32 %v112, %v122
    %v130 = vmul.f32 %v129, %v128
    %v131 = vld [vmem:[%s3] sm:$0x1]
    %v133 = vlaneseq
    %v134 = vshrl.u32 %v133, 7
    %v135 = vsub.s32 0, %v134
    %v136 = vrot.slane %v131, %v135
    %v138 = vmul.f32 %v130, %v136
    %v139 = vld [vmem:[%s4] sm:$0x1]
    %v141 = vlaneseq
    %v142 = vshrl.u32 %v141, 7
    %v143 = vsub.s32 0, %v142
    %v144 = vrot.slane %v139, %v143
    %v146 = vadd.f32 %v138, %v144
    %v147 = vtanh.pop %v146
    %148 = vst [vmem:[#allocation7] sm:$0xff] %v147
    // Predicated region
    $region30: #{tpu_custom_call.1} parent=1 // pred_check
      _
    $region31: #{tpu_custom_call.1} parent=1 // pred_check_branch
      %150 = sbr.rel (0) target = $region33
    $region32: #{tpu_custom_call.1} parent=1 // pred_region
      %s152 = ssub.s32 128, 128
      %153 = vsyncadd [#allocation4], %s152
      %s155 = sshll.u32 [#allocation7], 4
      %s156 = int_to_ptr.vmem [resolvable:$true] %s155
      %158 = dma.vmem_to_hbm [thread:$0]  %s156, 128, %s5, [#allocation4]
    $region33: #{tpu_custom_call.1} parent=1 // pred_fallthru
      _
    // Predicated region
    $region34: #{tpu_custom_call.1} parent=1 // pred_check
      _
    $region35: #{tpu_custom_call.1} parent=1 // pred_check_branch
      %160 = sbr.rel (0) target = $region37
    $region36: #{tpu_custom_call.1} parent=1 // pred_region
      %161 = dma.done [#allocation4], 128
    $region37: #{tpu_custom_call.1} parent=1 // pred_fallthru
      _
    %162 = vsyncpa [#allocation3], 1
    %163 = vsyncpa [#allocation6], 1
    %164 = vsyncpa [#allocation4], 1

// kernel: tpu_custom_call.1
$region0: #{tpu_custom_call.1}
  #allocation0 [shape = 'u32[]', space=smem, size = 0x4, offset = 0x4, fixed_abs, tag = 'smem constant byte address 0x4 - core index']
  #allocation1 [shape = 'u32[144,128]{1,0:T(1,128)}', space=vmem, size = 0x12000, scoped, tag = 'internal scratch']
  %s0 = inlined_call_operand.hbm [shape: f32[8,32], index: 0, kind: input, shape index: {}]
  %s1 = inlined_call_operand.hbm [shape: bf16[32,128], index: 1, kind: input, shape index: {}]
  %s2 = inlined_call_operand.vmem [shape: f32[1,128], index: 2, kind: input, shape index: {}]
  %s3 = inlined_call_operand.vmem [shape: f32[1,128], index: 3, kind: input, shape index: {}]
  %s4 = inlined_call_operand.vmem [shape: f32[1,128], index: 4, kind: input, shape index: {}]
  %s5 = inlined_call_operand.hbm [shape: f32[8,128], index: 5, kind: output, shape index: {}]
  %s6 = sld [smem:[#allocation0]]
  $region38: #{tpu_custom_call.1} parent=0
    _
  %s8 = ssub.s32 1, %s6
  %s9 = scalar_select 0, %s8, %s6
  $region1: #{tpu_custom_call.1} parent=0
    #allocation2 [shape = 'u8[4096]{0}', space=vmem, size = 0x1000, scoped, tag = 'input window, operand 0, single buffered']
    #allocation3 [shape = 's32[1]{0}', space=sflag, size = 0x4, scoped, tag = 'scoped memory for tpu_custom_call.1']
    #allocation4 [shape = 's32[1]{0}', space=sflag, size = 0x4, scoped, tag = 'scoped memory for tpu_custom_call.1']
    #allocation5 [shape = 'u8[8192]{0}', space=vmem, size = 0x2000, scoped, tag = 'input window, operand 1, single buffered']
    #allocation6 [shape = 's32[1]{0}', space=sflag, size = 0x4, scoped, tag = 'scoped memory for tpu_custom_call.1']
    #allocation7 [shape = 'u8[4096]{0}', space=vmem, size = 0x1000, scoped, tag = 'output window, operand 0, single buffered']
    %10 = vsyncpa [#allocation3], 0
    %11 = vsyncpa [#allocation6], 0
    %12 = vsyncpa [#allocation4], 0
    // Predicated region
    $region2: #{tpu_custom_call.1} parent=1 // pred_check
      _
    $region3: #{tpu_custom_call.1} parent=1 // pred_check_branch
      %14 = sbr.rel (0) target = $region5
    $region4: #{tpu_custom_call.1} parent=1 // pred_region
      %s16 = ssub.s32 128, 128
      %17 = vsyncadd [#allocation3], %s16
      %s19 = sshll.u32 [#allocation2], 4
      %s20 = int_to_ptr.vmem [resolvable:$true] %s19
      %22 = dma.hbm_to_vmem [thread:$0]  %s0, 128, %s20, [#allocation3]
    $region5: #{tpu_custom_call.1} parent=1 // pred_fallthru
      _
    // Predicated region
    $region6: #{tpu_custom_call.1} parent=1 // pred_check
      _
    $region7: #{tpu_custom_call.1} parent=1 // pred_check_branch
      %24 = sbr.rel (0) target = $region9
    $region8: #{tpu_custom_call.1} parent=1 // pred_region
      %s26 = ssub.s32 256, 256
      %27 = vsyncadd [#allocation6], %s26
      %s28 = sshll.u32 [#allocation5], 4
      %s29 = int_to_ptr.vmem [resolvable:$true] %s28
      %34 = dma.hbm_to_vmem [thread:$0]  %s1, 256, %s29, [#allocation6], 64, 64, 4
    $region9: #{tpu_custom_call.1} parent=1 // pred_fallthru
      _
    // Predicated region
    $region10: #{tpu_custom_call.1} parent=1 // pred_check
      _
    $region11: #{tpu_custom_call.1} parent=1 // pred_check_branch
      %36 = sbr.rel (0) target = $region13
    $region12: #{tpu_custom_call.1} parent=1 // pred_region
      _
    $region13: #{tpu_custom_call.1} parent=1 // pred_fallthru
      _
    // Predicated region
    $region14: #{tpu_custom_call.1} parent=1 // pred_check
      _
    $region15: #{tpu_custom_call.1} parent=1 // pred_check_branch
      %38 = sbr.rel (0) target = $region17
    $region16: #{tpu_custom_call.1} parent=1 // pred_region
      _
    $region17: #{tpu_custom_call.1} parent=1 // pred_fallthru
      _
    // Predicated region
    $region18: #{tpu_custom_call.1} parent=1 // pred_check
      _
    $region19: #{tpu_custom_call.1} parent=1 // pred_check_branch
      %40 = sbr.rel (0) target = $region21
    $region20: #{tpu_custom_call.1} parent=1 // pred_region
      _
    $region21: #{tpu_custom_call.1} parent=1 // pred_fallthru
      _
    // Predicated region
    $region22: #{tpu_custom_call.1} parent=1 // pred_check
      _
    $region23: #{tpu_custom_call.1} parent=1 // pred_check_branch
      %42 = sbr.rel (0) target = $region25
    $region24: #{tpu_custom_call.1} parent=1 // pred_region
      %43 = dma.done [#allocation3], 128
    $region25: #{tpu_custom_call.1} parent=1 // pred_fallthru
      _
    // Predicated region
    $region26: #{tpu_custom_call.1} parent=1 // pred_check
      _
    $region27: #{tpu_custom_call.1} parent=1 // pred_check_branch
      %45 = sbr.rel (0) target = $region29
    $region28: #{tpu_custom_call.1} parent=1 // pred_region
      %46 = dma.done [#allocation6], 256
    $region29: #{tpu_custom_call.1} parent=1 // pred_fallthru
      _
    %v48 = vld [vmem:[#allocation2] sm:$0xff]
    %v49 = vpack.c.bf16 %v48, %v48
    %v50 = vld [vmem:[#allocation5] sm:$0xf]
    %v51 = vld [vmem:[#allocation5 + $0x4] sm:$0xf]
    %v52 = vld [vmem:[#allocation5 + $0x8] sm:$0xf]
    %v53 = vld [vmem:[#allocation5 + $0xc] sm:$0xf]
    %v54 = vld [vmem:[%s2] sm:$0x1]
    %v56 = vlaneseq
    %v57 = vshrl.u32 %v56, 7
    %v58 = vsub.s32 0, %v57
    %v59 = vrot.slane %v54, %v58
    %v65 = vunpack.c.l.b16 %v50
    %v66 = vunpack.c.l.b16 %v51
    %v67 = vunpack.c.l.b16 %v52
    %v68 = vunpack.c.l.b16 %v53
    %v69 = vpack.c.b16 %v66, %v65
    %v70 = vpack.c.b16 %v68, %v67
    %vm73 = vcmask 261120
    %v75 = vsel %vm73, %v49, 0
    %77 = vmatprep.subr.bf16.mxu0 0
    %78 = vmatpush1.bf16.msra.mxu0 %v69
    %79 = vmatprep.subr.bf16.mxu0 0
    %80 = vmatpush1.bf16.msra.mxu0 %v70
    %81 = vmatprep.subr.bf16.mxu0 0
    %82 = vmatpush1.bf16.msra.mxu0 0
    %83 = vmatprep.subr.bf16.mxu0 0
    %84 = vmatpush1.bf16.msra.mxu0 0
    %85 = vmatprep.subr.bf16.mxu0 0
    %86 = vmatpush1.bf16.msra.mxu0 0
    %87 = vmatprep.subr.bf16.mxu0 0
    %88 = vmatpush1.bf16.msra.mxu0 0
    %89 = vmatprep.subr.bf16.mxu0 0
    %90 = vmatpush1.bf16.msra.mxu0 0
    %91 = vmatprep.subr.bf16.mxu0 0
    %92 = vmatpush1.bf16.msra.mxu0 0
    %93 = vmatprep.subr.bf16.mxu0 0
    %94 = vmatpush1.bf16.msra.mxu0 0
    %95 = vmatprep.subr.bf16.mxu0 0
    %96 = vmatpush1.bf16.msra.mxu0 0
    %97 = vmatprep.subr.bf16.mxu0 0
    %98 = vmatpush1.bf16.msra.mxu0 0
    %99 = vmatprep.subr.bf16.mxu0 0
    %100 = vmatpush1.bf16.msra.mxu0 0
    %101 = vmatprep.subr.bf16.mxu0 0
    %102 = vmatpush1.bf16.msra.mxu0 0
    %103 = vmatprep.subr.bf16.mxu0 0
    %104 = vmatpush1.bf16.msra.mxu0 0
    %105 = vmatprep.subr.bf16.mxu0 0
    %106 = vmatpush1.bf16.msra.mxu0 0
    %107 = vmatprep.subr.bf16.mxu0 0
    %108 = vmatpush1.bf16.msra.mxu0 0
    %109 = vmatprep.mubr.bf16.mxu0 0
    %110 = vmatmul.mubr.bf16.gmra.mrb[0].mxu0 %v75
    %v111 = vpop.f32.mrb[0].mxu0
    %v112 = vadd.f32 %v59, %v111
    %v113 = vpop.f32.mrb[0].mxu0
    %v114 = vpop.f32.mrb[0].mxu0
    %v115 = vpop.f32.mrb[0].mxu0
    %116 = vdwg.mxu0
    %117 = vadd.xlane.f32.xlu0 %v112
    %v118 = vpop.xlane.xlu0 %117
    %v119 = vmul.f32 %v112, %v112
    %120 = vadd.xlane.f32.xlu0 %v119
    %v121 = vpop.xlane.xlu0 %120
    %v122 = vmul.f32 %v118, 0.015625
    %v123 = vmul.f32 %v121, 0.015625
    %v124 = vmul.f32 %v122, %v122
    %v125 = vsub.f32 %v123, %v124
    %v126 = vmax.f32 %v125, 0.0
    %v127 = vadd.f32 %v126, 1e-05
    %v128 = vrsqrt.pop %v127
    %v129 = vsub.f32 %v112, %v122
    %v130 = vmul.f32 %v129, %v128
    %v131 = vld [vmem:[%s3] sm:$0x1]
    %v133 = vlaneseq
    %v134 = vshrl.u32 %v133, 7
    %v135 = vsub.s32 0, %v134
    %v136 = vrot.slane %v131, %v135
    %v138 = vmul.f32 %v130, %v136
    %v139 = vld [vmem:[%s4] sm:$0x1]
    %v141 = vlaneseq
    %v142 = vshrl.u32 %v141, 7
    %v143 = vsub.s32 0, %v142
    %v144 = vrot.slane %v139, %v143
    %v146 = vadd.f32 %v138, %v144
    %v147 = vtanh.pop %v146
    %148 = vst [vmem:[#allocation7] sm:$0xff] %v147
    // Predicated region
    $region30: #{tpu_custom_call.1} parent=1 // pred_check
      _
    $region31: #{tpu_custom_call.1} parent=1 // pred_check_branch
      %150 = sbr.rel (0) target = $region33
    $region32: #{tpu_custom_call.1} parent=1 // pred_region
      %s152 = ssub.s32 128, 128
      %153 = vsyncadd [#allocation4], %s152
      %s155 = sshll.u32 [#allocation7], 4
      %s156 = int_to_ptr.vmem [resolvable:$true] %s155
      %158 = dma.vmem_to_hbm [thread:$0]  %s156, 128, %s5, [#allocation4]
    $region33: #{tpu_custom_call.1} parent=1 // pred_fallthru
      _
    // Predicated region
    $region34: #{tpu_custom_call.1} parent=1 // pred_check
      _
    $region35: #{tpu_custom_call.1} parent=1 // pred_check_branch
      %160 = sbr.rel (0) target = $region37
    $region36: #{tpu_custom_call.1} parent=1 // pred_region
      %161 = dma.done [#allocation4], 128
    $region37: #{tpu_custom_call.1} parent=1 // pred_fallthru
      _
    %162 = vsyncpa [#allocation3], 1
    %163 = vsyncpa [#allocation6], 1
    %164 = vsyncpa [#allocation4], 1

</llo_original>
